<compile_context>
chip_gen: v6e
topology: v6e:2x2x1
jax: 0.10.0
libtpu: 0.0.40
codegen_flags: <defaults>
</compile_context>

<pallas_src>
import functools

import jax
import jax.numpy as jnp
from jax.experimental import pallas as pl
from jax.experimental.pallas import tpu as pltpu


def _rsmnorm_train_kernel(x_ref, ss_ref, out_ref, colsum_ref, *,
                          n_rows, row_tile, ragged):
    """Normalize one (row_tile, D) slab and emit its partial column-sum."""
    x = x_ref[...].astype(jnp.float32)            # (tm, D) f32
    ss = ss_ref[...]                              # (2, D)  f32, resident
    scale = ss[0:1, :]                            # (1, D)
    shift = ss[1:2, :]                            # (1, D)  = -mean * scale

    out_ref[...] = (x * scale + shift).astype(out_ref.dtype)

    # Unmasked partial column-sum on every tile (sublane reduce -> XLU slot).
    colsum_ref[...] = jnp.sum(x, axis=0, keepdims=True)[None]

    if ragged:
        # Only the last tile can contain Pallas-padded (unspecified) rows:
        # redo the sum there with a cheap (tm, 1) row mask instead of paying
        # a full (tm, D) iota + select on every grid step.
        @pl.when(pl.program_id(0) == pl.num_programs(0) - 1)
        def _():
            row_ids = (pl.program_id(0) * row_tile
                       + jax.lax.broadcasted_iota(jnp.int32, (row_tile, 1), 0))
            x_masked = jnp.where(row_ids < n_rows, x, 0.0)   # select, not mul
            colsum_ref[...] = jnp.sum(x_masked, axis=0, keepdims=True)[None]


def _rsmnorm_eval_kernel(x_ref, ss_ref, out_ref):
    """Eval-mode variant: no column-sum output at all."""
    x = x_ref[...].astype(jnp.float32)
    ss = ss_ref[...]
    out_ref[...] = (x * ss[0:1, :] + ss[1:2, :]).astype(out_ref.dtype)


def _round_up(n, m):
    return -(-n // m) * m


def _vmem_budget():
    """(per-tile byte budget, vmem_limit_bytes) sized per TPU generation."""
    cap = 128 * 1024 * 1024
    try:
        info = pltpu.get_tpu_info()
        cap = int(getattr(info, "vmem_capacity_bytes", cap) or cap)
    except Exception:
        pass
    if cap <= 64 * 1024 * 1024:
        # v7x: 64 MiB / TensorCore -> leave generous headroom.
        return 14 * 1024 * 1024, 40 * 1024 * 1024
    # v5e / v6e: 128 MiB VMEM -> bigger tiles, raised scoped limit.
    return 28 * 1024 * 1024, 56 * 1024 * 1024


def rsmnorm_forward(x, running_mean, running_variance, step, *,
                    eps=1e-5, training=True):
    """Pallas implementation of RSMNorm.forward.

    Returns (normed, new_mean, new_variance, new_step).  In eval mode the
    stats are returned unchanged (the PyTorch module only mutates its buffers
    when self.training is True).
    """
    orig_shape = x.shape
    dim = orig_shape[-1]
    assert dim == running_mean.shape[-1]

    x2d = x.reshape(-1, dim)                      # native dtype on the wire
    n_valid = x2d.shape[0]
    itemsize = jnp.dtype(x2d.dtype).itemsize

    # Lane folding for D < 128: fold `fold` consecutive rows into the lane
    # axis so loads and the normed store are lane-dense (no masked vst).
    fold = max(1, 128 // dim) if dim < 128 else 1
    row_align = 8 * fold                          # folded rows multiple of 8
    pad_rows = (-n_valid) % row_align
    if pad_rows:
        # Zero-padded rows contribute 0 to the column sum and are sliced off
        # the output; only misaligned shapes pay this copy.
        x2d = jnp.concatenate(
            [x2d, jnp.zeros((pad_rows, dim), x2d.dtype)], axis=0)
    dl = dim * fold
    n_arr = x2d.shape[0] // fold                  # folded rows, multiple of 8
    x_work = x2d.reshape(n_arr, dl)

    # scale/shift precomputed once in plain JAX: normed = x*scale + shift.
    mean1d = running_mean.reshape(-1).astype(jnp.float32)
    var1d = running_variance.reshape(-1).astype(jnp.float32)
    scale1d = 1.0 / jnp.maximum(jnp.sqrt(var1d), jnp.float32(eps))
    shift1d = -mean1d * scale1d
    if fold > 1:
        scale_l = jnp.tile(scale1d, fold)
        shift_l = jnp.tile(shift1d, fold)
    else:
        scale_l, shift_l = scale1d, shift1d
    ss = jnp.stack([scale_l, shift_l], axis=0)    # (2, dl) f32

    # ---- tile sizing (bytes, generation-aware) -----------------------------
    tile_budget, vmem_limit = _vmem_budget()
    # double-buffered x + out tiles (native dtype) + live f32 temporaries.
    bytes_per_row = 2 * dl * itemsize + 2 * dl * itemsize + 2 * dl * 4
    tm = max(8, (int(tile_budget // bytes_per_row) // 8) * 8)
    tm = min(tm, n_arr)
    # Ensure >= 2 grid steps when possible so the "parallel" axis actually
    # splits across both TensorCores on v7x (near-free on 1-TC parts).
    if tm >= n_arr and n_arr >= 16:
        tm = max(8, _round_up(n_arr // 2, 8))
    grid = (pl.cdiv(n_arr, tm),)
    num_tiles = grid[0]
    ragged = (n_arr % tm) != 0

    x_spec = pl.BlockSpec((tm, dl), lambda i: (i, 0))
    ss_spec = pl.BlockSpec((2, dl), lambda i: (0, 0))
    out_spec = pl.BlockSpec((tm, dl), lambda i: (i, 0))
    compiler_params = pltpu.CompilerParams(
        dimension_semantics=("parallel",),
        vmem_limit_bytes=vmem_limit,
    )

    if training:
        cost = pl.CostEstimate(
            flops=3 * n_arr * dl,                 # mul + add + colsum adds
            transcendentals=0,
            bytes_accessed=(2 * n_arr * dl * itemsize
                            + 2 * dl * 4 + num_tiles * dl * 4),
        )
        normed_work, partial_sums = pl.pallas_call(
            functools.partial(_rsmnorm_train_kernel,
                              n_rows=n_arr, row_tile=tm, ragged=ragged),
            out_shape=(
                jax.ShapeDtypeStruct((n_arr, dl), x_work.dtype),
                jax.ShapeDtypeStruct((num_tiles, 1, dl), jnp.float32),
            ),
            grid_spec=pltpu.PrefetchScalarGridSpec(
                num_scalar_prefetch=0,
                grid=grid,
                in_specs=[x_spec, ss_spec],
                out_specs=[out_spec,
                           pl.BlockSpec((1, 1, dl), lambda i: (i, 0, 0))],
            ),
            compiler_params=compiler_params,
            cost_estimate=cost,
        )(x_work, ss)
    else:
        cost = pl.CostEstimate(
            flops=2 * n_arr * dl,
            transcendentals=0,
            bytes_accessed=2 * n_arr * dl * itemsize + 2 * dl * 4,
        )
        normed_work = pl.pallas_call(
            _rsmnorm_eval_kernel,
            out_shape=jax.ShapeDtypeStruct((n_arr, dl), x_work.dtype),
            grid_spec=pltpu.PrefetchScalarGridSpec(
                num_scalar_prefetch=0,
                grid=grid,
                in_specs=[x_spec, ss_spec],
                out_specs=out_spec,
            ),
            compiler_params=compiler_params,
            cost_estimate=cost,
        )(x_work, ss)

    normed = normed_work.reshape(-1, dim)[:n_valid].reshape(orig_shape)

    if not training:
        return normed, running_mean, running_variance, step

    # torch.no_grad() running-stat update (tiny vector glue in plain JAX).
    col_sum = jnp.sum(partial_sums, axis=(0, 1))          # (dl,) f32
    if fold > 1:
        col_sum = col_sum.reshape(fold, dim).sum(axis=0)  # unfold -> (dim,)
    time = step.astype(jnp.float32)                       # step >= 1
    new_obs_mean = col_sum / jnp.float32(n_valid)         # '... d -> d' mean
    delta = new_obs_mean - mean1d
    new_mean = mean1d + delta / time
    # TODO(synk): matches the PyTorch module as written; note it only folds the
    # mean-shift term into the variance (no within-batch variance term).
    new_variance = (time - 1.0) / time * (var1d + delta ** 2 / time)
    new_step = step + 1

    return normed, new_mean, new_variance, new_step


def _rsmnorm_reference(x, mean, var, eps=1e-5):
    return (x - mean) / jnp.maximum(jnp.sqrt(var), eps)


if __name__ == "__main__":
    key = jax.random.PRNGKey(0)
    batch, seq, dim = 2, 8, 32

    kx, km, kv = jax.random.split(key, 3)
    x = jax.random.normal(kx, (batch, seq, dim), dtype=jnp.float32)

    # Buffers as in __init__, perturbed so normalization is non-trivial.
    running_mean = jnp.zeros((dim,), jnp.float32) + 0.1 * jax.random.normal(km, (dim,))
    running_variance = jnp.ones((dim,), jnp.float32) + 0.05 * jnp.abs(
        jax.random.normal(kv, (dim,)))
    step = jnp.array(1, dtype=jnp.int32)

    normed, new_mean, new_var, new_step = rsmnorm_forward(
        x, running_mean, running_variance, step, training=True)
    jax.block_until_ready((normed, new_mean, new_var, new_step))

    # Check against a pure-JAX reference.
    ref = _rsmnorm_reference(x, running_mean, running_variance)
    assert normed.dtype == x.dtype
    assert jnp.allclose(normed, ref, atol=1e-5, rtol=1e-5), "normed mismatch"

    x2d = x.reshape(-1, dim)
    obs_mean = x2d.mean(axis=0)
    delta = obs_mean - running_mean
    t = jnp.float32(1.0)
    ref_mean = running_mean + delta / t
    ref_var = (t - 1.0) / t * (running_variance + delta ** 2 / t)
    assert jnp.allclose(new_mean, ref_mean, atol=1e-5, rtol=1e-5), "mean update mismatch"
    assert jnp.allclose(new_var, ref_var, atol=1e-5, rtol=1e-5), "var update mismatch"
    assert int(new_step) == 2

    # Eval mode: buffers untouched, no colsum work.
    normed_eval, m_e, v_e, s_e = rsmnorm_forward(
        x, running_mean, running_variance, step, training=False)
    jax.block_until_ready(normed_eval)
    assert jnp.allclose(normed_eval, ref, atol=1e-5, rtol=1e-5)
    assert m_e is running_mean and v_e is running_variance and s_e is step

    print("KERNEL_OK")
</pallas_src>

<mosaic_0001>
module attributes {stable_mosaic.version = 11 : i64} {
  func.func @_rsmnorm_train_kernel(%arg0: i32, %arg1: memref<8x128xf32, #tpu.memory_space<vmem>>, %arg2: memref<2x128xf32, #tpu.memory_space<vmem>>, %arg3: memref<8x128xf32, #tpu.memory_space<vmem>>, %arg4: memref<1x1x128xf32, #tpu.memory_space<vmem>>) attributes {dimension_semantics = [#tpu.dimension_semantics<parallel>], iteration_bounds = array<i64: 1>, scalar_prefetch = 0 : i64, scratch_operands = 0 : i64, tpu.core_type = #tpu.core_type<tc>, window_params = [{transform_indices = @transform_0, window_bounds = array<i64: 8, 128>}, {pipeline_mode = #tpu.pipeline_mode<synchronous>, transform_indices = @transform_1, window_bounds = array<i64: 2, 128>}, {transform_indices = @transform_2, window_bounds = array<i64: 8, 128>}, {transform_indices = @transform_3, window_bounds = array<i64: 1, 1, 128>}]} {
    %c0 = arith.constant 0 : index
    %c0_0 = arith.constant 0 : index
    %0 = vector.load %arg1[%c0, %c0_0] : memref<8x128xf32, #tpu.memory_space<vmem>>, vector<8x128xf32>
    %c0_1 = arith.constant 0 : index
    %c0_2 = arith.constant 0 : index
    %1 = vector.load %arg2[%c0_1, %c0_2] : memref<2x128xf32, #tpu.memory_space<vmem>>, vector<2x128xf32>
    %2 = vector.extract_strided_slice %1 {offsets = [0, 0], sizes = [1, 128], strides = [1, 1]} : vector<2x128xf32> to vector<1x128xf32>
    %3 = vector.extract_strided_slice %1 {offsets = [1, 0], sizes = [1, 128], strides = [1, 1]} : vector<2x128xf32> to vector<1x128xf32>
    %4 = vector.broadcast %2 : vector<1x128xf32> to vector<8x128xf32>
    %5 = arith.mulf %0, %4 : vector<8x128xf32>
    %6 = vector.broadcast %3 : vector<1x128xf32> to vector<8x128xf32>
    %7 = arith.addf %5, %6 : vector<8x128xf32>
    %c0_3 = arith.constant 0 : index
    %c0_4 = arith.constant 0 : index
    %8 = vector.load %arg3[%c0_3, %c0_4] : memref<8x128xf32, #tpu.memory_space<vmem>>, vector<8x128xf32>
    tpu.vector_store %arg3[%c0_3, %c0_4], %7 {strides = array<i32>} : memref<8x128xf32, #tpu.memory_space<vmem>>, vector<8x128xf32>,
    %cst = arith.constant dense<0.000000e+00> : vector<128xf32>
    %9 = vector.multi_reduction <add>, %0, %cst [0] : vector<8x128xf32> to vector<128xf32>
    %10 = vector.shape_cast %9 : vector<128xf32> to vector<1x128xf32>
    %11 = vector.shape_cast %10 : vector<1x128xf32> to vector<1x1x128xf32>
    %c0_5 = arith.constant 0 : index
    %c0_6 = arith.constant 0 : index
    %c0_7 = arith.constant 0 : index
    %12 = vector.load %arg4[%c0_5, %c0_6, %c0_7] : memref<1x1x128xf32, #tpu.memory_space<vmem>>, vector<1x1x128xf32>
    tpu.vector_store %arg4[%c0_5, %c0_6, %c0_7], %11 {strides = array<i32>} : memref<1x1x128xf32, #tpu.memory_space<vmem>>, vector<1x1x128xf32>,
    return
  }
  func.func @transform_0(%arg0: i32) -> (i32, i32) {
    %c0_i32 = arith.constant 0 : i32
    %c0_i32_0 = arith.constant 0 : i32
    return %arg0, %c0_i32 : i32, i32
  }
  func.func @transform_1(%arg0: i32) -> (i32, i32) {
    %c0_i32 = arith.constant 0 : i32
    %c0_i32_0 = arith.constant 0 : i32
    %c0_i32_1 = arith.constant 0 : i32
    return %c0_i32, %c0_i32_0 : i32, i32
  }
  func.func @transform_2(%arg0: i32) -> (i32, i32) {
    %c0_i32 = arith.constant 0 : i32
    %c0_i32_0 = arith.constant 0 : i32
    return %arg0, %c0_i32 : i32, i32
  }
  func.func @transform_3(%arg0: i32) -> (i32, i32, i32) {
    %c0_i32 = arith.constant 0 : i32
    %c0_i32_0 = arith.constant 0 : i32
    %c0_i32_1 = arith.constant 0 : i32
    return %arg0, %c0_i32, %c0_i32_0 : i32, i32, i32
  }
}

</mosaic_0001>

<llo_original>
// kernel: tpu_custom_call.1
$region0: #{tpu_custom_call.1}
  #allocation0 [shape = 'u32[]', space=smem, size = 0x4, offset = 0x4, fixed_abs, tag = 'smem constant byte address 0x4 - core index']
  #allocation1 [shape = 'u32[144,128]{1,0:T(1,128)}', space=vmem, size = 0x12000, scoped, tag = 'internal scratch']
  %s0 = inlined_call_operand.hbm [shape: f32[8,128], index: 0, kind: input, shape index: {}]
  %s1 = inlined_call_operand.hbm [shape: f32[2,128], index: 1, kind: input, shape index: {}]
  %s2 = inlined_call_operand.hbm [shape: f32[8,128], index: 2, kind: output, shape index: {0}]
  %s3 = inlined_call_operand.hbm [shape: f32[1,1,128], index: 3, kind: output, shape index: {1}]
  %4 = xla_tuple %s2, %s3
  %s5 = sld [smem:[#allocation0]]
  $region34: #{tpu_custom_call.1} parent=0
    _
  %s7 = ssub.s32 1, %s5
  %s8 = scalar_select 0, %s7, %s5
  $region1: #{tpu_custom_call.1} parent=0
    #allocation2 [shape = 'u8[4096]{0}', space=vmem, size = 0x1000, scoped, tag = 'input window, operand 0, single buffered']
    #allocation3 [shape = 's32[1]{0}', space=sflag, size = 0x4, scoped, tag = 'scoped memory for tpu_custom_call.1']
    #allocation4 [shape = 's32[1]{0}', space=sflag, size = 0x4, scoped, tag = 'scoped memory for tpu_custom_call.1']
    #allocation5 [shape = 'u8[1024]{0}', space=vmem, size = 0x400, scoped, tag = 'input window, operand 1, single buffered']
    #allocation6 [shape = 's32[1]{0}', space=sflag, size = 0x4, scoped, tag = 'scoped memory for tpu_custom_call.1']
    #allocation7 [shape = 'u8[4096]{0}', space=vmem, size = 0x1000, scoped, tag = 'output window, operand 0, single buffered']
    #allocation8 [shape = 'u8[512]{0}', space=vmem, size = 0x400, scoped, tag = 'output window, operand 1, single buffered']
    #allocation9 [shape = 's32[1]{0}', space=sflag, size = 0x4, scoped, tag = 'scoped memory for tpu_custom_call.1']
    %9 = vsyncpa [#allocation3], 0
    %10 = vsyncpa [#allocation6], 0
    %11 = vsyncpa [#allocation4], 0
    %12 = vsyncpa [#allocation9], 0
    // Predicated region
    $region2: #{tpu_custom_call.1} parent=1 // pred_check
      _
    $region3: #{tpu_custom_call.1} parent=1 // pred_check_branch
      %14 = sbr.rel (0) target = $region5
    $region4: #{tpu_custom_call.1} parent=1 // pred_region
      %s16 = ssub.s32 128, 128
      %17 = vsyncadd [#allocation3], %s16
      %s19 = sshll.u32 [#allocation2], 4
      %s20 = int_to_ptr.vmem [resolvable:$true] %s19
      %22 = dma.hbm_to_vmem [thread:$0]  %s0, 128, %s20, [#allocation3]
    $region5: #{tpu_custom_call.1} parent=1 // pred_fallthru
      _
    // Predicated region
    $region6: #{tpu_custom_call.1} parent=1 // pred_check
      _
    $region7: #{tpu_custom_call.1} parent=1 // pred_check_branch
      %24 = sbr.rel (0) target = $region9
    $region8: #{tpu_custom_call.1} parent=1 // pred_region
      %s26 = ssub.s32 32, 32
      %27 = vsyncadd [#allocation6], %s26
      %s29 = sshll.u32 [#allocation5], 4
      %s30 = int_to_ptr.vmem [resolvable:$true] %s29
      %32 = dma.hbm_to_vmem [thread:$0]  %s1, 32, %s30, [#allocation6]
    $region9: #{tpu_custom_call.1} parent=1 // pred_fallthru
      _
    // Predicated region
    $region10: #{tpu_custom_call.1} parent=1 // pred_check
      _
    $region11: #{tpu_custom_call.1} parent=1 // pred_check_branch
      %34 = sbr.rel (0) target = $region13
    $region12: #{tpu_custom_call.1} parent=1 // pred_region
      %35 = dma.done [#allocation3], 128
    $region13: #{tpu_custom_call.1} parent=1 // pred_fallthru
      _
    // Predicated region
    $region14: #{tpu_custom_call.1} parent=1 // pred_check
      _
    $region15: #{tpu_custom_call.1} parent=1 // pred_check_branch
      %37 = sbr.rel (0) target = $region17
    $region16: #{tpu_custom_call.1} parent=1 // pred_region
      %38 = dma.done [#allocation6], 32
    $region17: #{tpu_custom_call.1} parent=1 // pred_fallthru
      _
    %v39 = vld [vmem:[#allocation2] sm:$0xff]
    %v40 = vld [vmem:[#allocation5] sm:$0x3]
    %v41 = vlaneseq
    %v42 = vshrl.u32 %v41, 7
    %v43 = vsub.s32 0, %v42
    %v44 = vrot.slane %v40, %v43
    %v45 = vmul.f32 %v39, %v44
    %v46 = vlaneseq
    %v47 = vshrl.u32 %v46, 7
    %v48 = vsub.s32 1, %v47
    %v49 = vrot.slane %v40, %v48
    %v50 = vadd.f32 %v45, %v49
    %51 = vst [vmem:[#allocation7] sm:$0xff] %v50
    %v52 = vrot.slane %v39, 4
    %v53 = vadd.f32 %v39, %v52
    %v54 = vrot.slane %v53, 2
    %v55 = vadd.f32 %v53, %v54
    %v56 = vrot.slane %v55, 1
    %v57 = vadd.f32 %v55, %v56
    %58 = vst [vmem:[#allocation8] sm:$0x1] %v57
    // Predicated region
    $region18: #{tpu_custom_call.1} parent=1 // pred_check
      _
    $region19: #{tpu_custom_call.1} parent=1 // pred_check_branch
      %60 = sbr.rel (0) target = $region21
    $region20: #{tpu_custom_call.1} parent=1 // pred_region
      %s62 = ssub.s32 128, 128
      %63 = vsyncadd [#allocation4], %s62
      %s65 = sshll.u32 [#allocation7], 4
      %s66 = int_to_ptr.vmem [resolvable:$true] %s65
      %68 = dma.vmem_to_hbm [thread:$0]  %s66, 128, %s2, [#allocation4]
    $region21: #{tpu_custom_call.1} parent=1 // pred_fallthru
      _
    // Predicated region
    $region22: #{tpu_custom_call.1} parent=1 // pred_check
      _
    $region23: #{tpu_custom_call.1} parent=1 // pred_check_branch
      %70 = sbr.rel (0) target = $region25
    $region24: #{tpu_custom_call.1} parent=1 // pred_region
      %s72 = ssub.s32 16, 16
      %73 = vsyncadd [#allocation9], %s72
      %s75 = sshll.u32 [#allocation8], 4
      %s76 = int_to_ptr.vmem [resolvable:$true] %s75
      %78 = dma.vmem_to_hbm [thread:$0]  %s76, 16, %s3, [#allocation9]
    $region25: #{tpu_custom_call.1} parent=1 // pred_fallthru
      _
    // Predicated region
    $region26: #{tpu_custom_call.1} parent=1 // pred_check
      _
    $region27: #{tpu_custom_call.1} parent=1 // pred_check_branch
      %80 = sbr.rel (0) target = $region29
    $region28: #{tpu_custom_call.1} parent=1 // pred_region
      %81 = dma.done [#allocation4], 128
    $region29: #{tpu_custom_call.1} parent=1 // pred_fallthru
      _
    // Predicated region
    $region30: #{tpu_custom_call.1} parent=1 // pred_check
      _
    $region31: #{tpu_custom_call.1} parent=1 // pred_check_branch
      %83 = sbr.rel (0) target = $region33
    $region32: #{tpu_custom_call.1} parent=1 // pred_region
      %84 = dma.done [#allocation9], 16
    $region33: #{tpu_custom_call.1} parent=1 // pred_fallthru
      _
    %85 = vsyncpa [#allocation3], 1
    %86 = vsyncpa [#allocation6], 1
    %87 = vsyncpa [#allocation4], 1
    %88 = vsyncpa [#allocation9], 1

</llo_original>
